<compile_context>
chip_gen: v6e
topology: v6e:2x2x1
jax: 0.10.0
libtpu: 0.0.40
codegen_flags: <defaults>
</compile_context>

<pallas_src>
import functools

import jax
import jax.numpy as jnp
from jax.experimental import pallas as pl
from jax.experimental.pallas import tpu as pltpu


def _mlp_kernel(mlptype, num_layers, *refs):
    # refs = (x_ref, w0_ref, ..., w{L-1}_ref, o_ref); all blocks live in VMEM.
    x_ref = refs[0]
    w_refs = refs[1:1 + num_layers]
    o_ref = refs[-1]

    h = x_ref[...]                                   # f32 activations
    for l in range(num_layers):
        # MXU matmul with f32 accumulation (weights already block-diagonal
        # expanded in the wrapper, so lane/contraction dims are MXU friendly).
        h = jnp.dot(h, w_refs[l][...], preferred_element_type=jnp.float32)
        if l != num_layers - 1:
            if mlptype == 'opacity':
                h = jax.nn.sigmoid(h)                # EUP exp (free slot) + VPU
            elif mlptype == 'color':
                h = jnp.maximum(h, 0.0)              # relu on VPU
    o_ref[...] = h.astype(o_ref.dtype)


def _round_up(n, m):
    return -(-n // m) * m


def mlp_pallas(x, weights_t, mlptype, *, tile_rows=512, target_lanes=256):
    """x: [..., dim_in]; weights_t: list of [in, out] matrices (pre-transposed)."""
    num_layers = len(weights_t)
    dim_in = x.shape[-1]
    dim_out = weights_t[-1].shape[1]

    lead_shape = x.shape[:-1]
    x2d = x.reshape(-1, dim_in)
    N = x2d.shape[0]

    # ---- pick the row->lane packing factor --------------------------------
    # Pack p rows per lane-row so the widest packed feature dim is ~256 lanes
    # (one v6e/v7x MXU panel).  Falls back to p=1 for already-wide MLPs.
    max_feat = max(max(w.shape) for w in weights_t)
    p = max(1, target_lanes // max_feat)

    if p > 1:
        eye = jnp.eye(p, dtype=weights_t[0].dtype)
        # kron(I_p, W)[i*din+k, i*dout+c] = W[k, c] -> block-diagonal expansion.
        weights_big = [jnp.kron(eye, w) for w in weights_t]
    else:
        weights_big = list(weights_t)

    din_p = p * dim_in
    dout_p = p * dim_out

    # ---- choose packed-row tile & pad rows ---------------------------------
    R = _round_up(N, p) // p                 # packed rows needed
    if R <= tile_rows:
        tile_r = max(8, _round_up(R, 8))     # single grid step, sublane aligned
        R_pad = tile_r
    else:
        tile_r = tile_rows
        R_pad = _round_up(R, tile_r)
    N_pad = R_pad * p

    if N_pad != N:
        x2d = jnp.pad(x2d, ((0, N_pad - N), (0, 0)))   # zero tail, sliced later
    x_packed = x2d.reshape(R_pad, din_p)               # free row-major reshape

    in_specs = [pl.BlockSpec((tile_r, din_p), lambda i: (i, 0))]
    for w in weights_big:
        # Full weight resident in VMEM; constant block index -> no re-DMA.
        in_specs.append(pl.BlockSpec(w.shape, lambda i: (0, 0)))
    out_spec = pl.BlockSpec((tile_r, dout_p), lambda i: (i, 0))

    kernel = functools.partial(_mlp_kernel, mlptype, num_layers)

    out_packed = pl.pallas_call(
        kernel,
        out_shape=jax.ShapeDtypeStruct((R_pad, dout_p), x.dtype),
        grid=(R_pad // tile_r,),
        in_specs=in_specs,
        out_specs=out_spec,
        compiler_params=pltpu.CompilerParams(
            dimension_semantics=("parallel",)),
    )(x_packed, *weights_big)

    out = out_packed.reshape(N_pad, dim_out)[:N].reshape(*lead_shape, dim_out)
    if mlptype == 'opacity':
        return out[..., :1], out[..., 1:]
    return out


def mlp_reference(x, weights_t, mlptype):
    """Pure-JAX reference mirroring the PyTorch forward."""
    num_layers = len(weights_t)
    h = x
    for l in range(num_layers):
        h = h @ weights_t[l]
        if l != num_layers - 1:
            if mlptype == 'opacity':
                h = jax.nn.sigmoid(h)
            elif mlptype == 'color':
                h = jnp.maximum(h, 0.0)
    if mlptype == 'opacity':
        return h[..., :1], h[..., 1:]
    return h


def make_weights(key, dim_in, dim_out, dim_hidden, num_layers):
    """Deterministic params; returns list of [in, out] matrices."""
    ws = []
    for l in range(num_layers):
        d_in = dim_in if l == 0 else dim_hidden
        d_out = dim_out if l == num_layers - 1 else dim_hidden
        key, sub = jax.random.split(key)
        # nn.Linear default init scale ~ 1/sqrt(fan_in)
        w = jax.random.uniform(sub, (d_in, d_out), jnp.float32,
                               minval=-1.0, maxval=1.0) / jnp.sqrt(d_in)
        ws.append(w)
    return ws


if __name__ == "__main__":
    key = jax.random.PRNGKey(0)
    dim_in, dim_hidden, dim_out, num_layers = 4, 32, 4, 3

    kx1, kx2, kx3, kw1, kw2 = jax.random.split(key, 5)
    # primary small case: 2x8 = 16 rows (single grid step, packed to 8 rows)
    x_a = jax.random.normal(kx1, (2, 8, dim_in), jnp.float32)
    # ragged case: 3x5 = 15 rows, exercises the zero-pad tail path
    x_b = jax.random.normal(kx2, (3, 5, dim_in), jnp.float32)
    # multi-step case: 4x1100 = 4400 rows -> >1 grid step at tile_rows=512
    x_c = jax.random.normal(kx3, (4, 1100, dim_in), jnp.float32)

    ok = True
    for mlptype, kw in (('opacity', kw1), ('color', kw2)):
        weights_t = make_weights(kw, dim_in, dim_out, dim_hidden, num_layers)
        for x in (x_a, x_b, x_c):
            out = mlp_pallas(x, weights_t, mlptype)
            out = jax.block_until_ready(out)
            ref = mlp_reference(x, weights_t, mlptype)
            if mlptype == 'opacity':
                ok &= bool(jnp.allclose(out[0], ref[0], atol=1e-5))
                ok &= bool(jnp.allclose(out[1], ref[1], atol=1e-5))
            else:
                ok &= bool(jnp.allclose(out, ref, atol=1e-5))

    if ok:
        print("KERNEL_OK")
</pallas_src>

<mosaic_0001>
module attributes {stable_mosaic.version = 11 : i64} {
  func.func @_mlp_kernel(%arg0: i32, %arg1: memref<8x32xf32, #tpu.memory_space<vmem>>, %arg2: memref<32x256xf32, #tpu.memory_space<vmem>>, %arg3: memref<256x256xf32, #tpu.memory_space<vmem>>, %arg4: memref<256x32xf32, #tpu.memory_space<vmem>>, %arg5: memref<8x32xf32, #tpu.memory_space<vmem>>) attributes {dimension_semantics = [#tpu.dimension_semantics<parallel>], iteration_bounds = array<i64: 1>, scalar_prefetch = 0 : i64, scratch_operands = 0 : i64, tpu.core_type = #tpu.core_type<tc>, window_params = [{transform_indices = @transform_0, window_bounds = array<i64: 8, 32>}, {pipeline_mode = #tpu.pipeline_mode<synchronous>, transform_indices = @transform_1, window_bounds = array<i64: 32, 256>}, {pipeline_mode = #tpu.pipeline_mode<synchronous>, transform_indices = @transform_2, window_bounds = array<i64: 256, 256>}, {pipeline_mode = #tpu.pipeline_mode<synchronous>, transform_indices = @transform_3, window_bounds = array<i64: 256, 32>}, {transform_indices = @transform_4, window_bounds = array<i64: 8, 32>}]} {
    %c0 = arith.constant 0 : index
    %c0_0 = arith.constant 0 : index
    %0 = vector.load %arg1[%c0, %c0_0] : memref<8x32xf32, #tpu.memory_space<vmem>>, vector<8x32xf32>
    %c0_1 = arith.constant 0 : index
    %c0_2 = arith.constant 0 : index
    %1 = vector.load %arg2[%c0_1, %c0_2] : memref<32x256xf32, #tpu.memory_space<vmem>>, vector<32x256xf32>
    %cst = arith.constant dense<0.000000e+00> : vector<8x256xf32>
    %2 = tpu.matmul %0, %1, %cst {dimension_numbers = #tpu.dot_dimension_numbers<[1], [0], [0], [1], [0, 0, 1, 1], [], []>} : vector<8x32xf32>, vector<32x256xf32>, vector<8x256xf32> -> vector<8x256xf32>
    %3 = arith.negf %2 : vector<8x256xf32>
    %4 = math.exp %3 : vector<8x256xf32>
    %cst_3 = arith.constant 1.000000e+00 : f32
    %5 = vector.broadcast %cst_3 : f32 to vector<8x256xf32>
    %6 = arith.addf %5, %4 : vector<8x256xf32>
    %7 = arith.divf %5, %6 : vector<8x256xf32>
    %c0_4 = arith.constant 0 : index
    %c0_5 = arith.constant 0 : index
    %8 = vector.load %arg3[%c0_4, %c0_5] : memref<256x256xf32, #tpu.memory_space<vmem>>, vector<256x256xf32>
    %cst_6 = arith.constant dense<0.000000e+00> : vector<8x256xf32>
    %9 = tpu.matmul %7, %8, %cst_6 {dimension_numbers = #tpu.dot_dimension_numbers<[1], [0], [0], [1], [0, 0, 1, 1], [], []>} : vector<8x256xf32>, vector<256x256xf32>, vector<8x256xf32> -> vector<8x256xf32>
    %10 = arith.negf %9 : vector<8x256xf32>
    %11 = math.exp %10 : vector<8x256xf32>
    %cst_7 = arith.constant 1.000000e+00 : f32
    %12 = vector.broadcast %cst_7 : f32 to vector<8x256xf32>
    %13 = arith.addf %12, %11 : vector<8x256xf32>
    %14 = arith.divf %12, %13 : vector<8x256xf32>
    %c0_8 = arith.constant 0 : index
    %c0_9 = arith.constant 0 : index
    %15 = vector.load %arg4[%c0_8, %c0_9] : memref<256x32xf32, #tpu.memory_space<vmem>>, vector<256x32xf32>
    %cst_10 = arith.constant dense<0.000000e+00> : vector<8x32xf32>
    %16 = tpu.matmul %14, %15, %cst_10 {dimension_numbers = #tpu.dot_dimension_numbers<[1], [0], [0], [1], [0, 0, 1, 1], [], []>} : vector<8x256xf32>, vector<256x32xf32>, vector<8x32xf32> -> vector<8x32xf32>
    %c0_11 = arith.constant 0 : index
    %c0_12 = arith.constant 0 : index
    %17 = vector.load %arg5[%c0_11, %c0_12] : memref<8x32xf32, #tpu.memory_space<vmem>>, vector<8x32xf32>
    tpu.vector_store %arg5[%c0_11, %c0_12], %16 {strides = array<i32>} : memref<8x32xf32, #tpu.memory_space<vmem>>, vector<8x32xf32>,
    return
  }
  func.func @transform_0(%arg0: i32) -> (i32, i32) {
    %c0_i32 = arith.constant 0 : i32
    %c0_i32_0 = arith.constant 0 : i32
    return %arg0, %c0_i32 : i32, i32
  }
  func.func @transform_1(%arg0: i32) -> (i32, i32) {
    %c0_i32 = arith.constant 0 : i32
    %c0_i32_0 = arith.constant 0 : i32
    %c0_i32_1 = arith.constant 0 : i32
    return %c0_i32, %c0_i32_0 : i32, i32
  }
  func.func @transform_2(%arg0: i32) -> (i32, i32) {
    %c0_i32 = arith.constant 0 : i32
    %c0_i32_0 = arith.constant 0 : i32
    %c0_i32_1 = arith.constant 0 : i32
    return %c0_i32, %c0_i32_0 : i32, i32
  }
  func.func @transform_3(%arg0: i32) -> (i32, i32) {
    %c0_i32 = arith.constant 0 : i32
    %c0_i32_0 = arith.constant 0 : i32
    %c0_i32_1 = arith.constant 0 : i32
    return %c0_i32, %c0_i32_0 : i32, i32
  }
  func.func @transform_4(%arg0: i32) -> (i32, i32) {
    %c0_i32 = arith.constant 0 : i32
    %c0_i32_0 = arith.constant 0 : i32
    return %arg0, %c0_i32 : i32, i32
  }
}

</mosaic_0001>

<llo_original>
// kernel: tpu_custom_call.1
$region0: #{tpu_custom_call.1}
  #allocation0 [shape = 'u32[]', space=smem, size = 0x4, offset = 0x4, fixed_abs, tag = 'smem constant byte address 0x4 - core index']
  #allocation1 [shape = 'u32[144,128]{1,0:T(1,128)}', space=vmem, size = 0x12000, scoped, tag = 'internal scratch']
  %s0 = inlined_call_operand.vmem [shape: f32[8,32], index: 0, kind: input, shape index: {}]
  %s1 = inlined_call_operand.vmem [shape: f32[32,256], index: 1, kind: input, shape index: {}]
  %s2 = inlined_call_operand.hbm [shape: f32[256,256], index: 2, kind: input, shape index: {}]
  %s3 = inlined_call_operand.vmem [shape: f32[256,32], index: 3, kind: input, shape index: {}]
  %s4 = inlined_call_operand.hbm [shape: f32[8,32], index: 4, kind: output, shape index: {}]
  %s5 = sld [smem:[#allocation0]]
  $region30: #{tpu_custom_call.1} parent=0
    _
  %s7 = ssub.s32 1, %s5
  %s8 = scalar_select 0, %s7, %s5
  $region1: #{tpu_custom_call.1} parent=0
    #allocation2 [shape = 'u8[262144]{0}', space=vmem, size = 0x40000, scoped, tag = 'input window, operand 2, single buffered']
    #allocation3 [shape = 's32[1]{0}', space=sflag, size = 0x4, scoped, tag = 'scoped memory for tpu_custom_call.1']
    #allocation4 [shape = 's32[1]{0}', space=sflag, size = 0x4, scoped, tag = 'scoped memory for tpu_custom_call.1']
    #allocation5 [shape = 'u8[4096]{0}', space=vmem, size = 0x1000, scoped, tag = 'output window, operand 0, single buffered']
    %9 = vsyncpa [#allocation3], 0
    %10 = vsyncpa [#allocation4], 0
    // Predicated region
    $region2: #{tpu_custom_call.1} parent=1 // pred_check
      _
    $region3: #{tpu_custom_call.1} parent=1 // pred_check_branch
      %12 = sbr.rel (0) target = $region5
    $region4: #{tpu_custom_call.1} parent=1 // pred_region
      _
    $region5: #{tpu_custom_call.1} parent=1 // pred_fallthru
      _
    // Predicated region
    $region6: #{tpu_custom_call.1} parent=1 // pred_check
      _
    $region7: #{tpu_custom_call.1} parent=1 // pred_check_branch
      %14 = sbr.rel (0) target = $region9
    $region8: #{tpu_custom_call.1} parent=1 // pred_region
      _
    $region9: #{tpu_custom_call.1} parent=1 // pred_fallthru
      _
    // Predicated region
    $region10: #{tpu_custom_call.1} parent=1 // pred_check
      _
    $region11: #{tpu_custom_call.1} parent=1 // pred_check_branch
      %16 = sbr.rel (0) target = $region13
    $region12: #{tpu_custom_call.1} parent=1 // pred_region
      %s18 = ssub.s32 8192, 8192
      %19 = vsyncadd [#allocation3], %s18
      %s20 = sshll.u32 [#allocation2], 4
      %s21 = int_to_ptr.vmem [resolvable:$true] %s20
      %26 = dma.hbm_to_vmem [thread:$0]  %s2, 8192, %s21, [#allocation3], 256, 256, 16
    $region13: #{tpu_custom_call.1} parent=1 // pred_fallthru
      _
    // Predicated region
    $region14: #{tpu_custom_call.1} parent=1 // pred_check
      _
    $region15: #{tpu_custom_call.1} parent=1 // pred_check_branch
      %28 = sbr.rel (0) target = $region17
    $region16: #{tpu_custom_call.1} parent=1 // pred_region
      _
    $region17: #{tpu_custom_call.1} parent=1 // pred_fallthru
      _
    // Predicated region
    $region18: #{tpu_custom_call.1} parent=1 // pred_check
      _
    $region19: #{tpu_custom_call.1} parent=1 // pred_check_branch
      %30 = sbr.rel (0) target = $region21
    $region20: #{tpu_custom_call.1} parent=1 // pred_region
      %31 = dma.done [#allocation3], 8192
    $region21: #{tpu_custom_call.1} parent=1 // pred_fallthru
      _
    %v32 = vld [vmem:[%s0] sm:$0xff]
    %v33 = vld [vmem:[%s1] sm:$0xff]
    %v34 = vld [vmem:[%s1 + $0x8] sm:$0xff]
    %v35 = vld [vmem:[%s1 + $0x10] sm:$0xff]
    %v36 = vld [vmem:[%s1 + $0x18] sm:$0xff]
    %v37 = vld [vmem:[%s1 + $0x20] sm:$0xff]
    %v38 = vld [vmem:[%s1 + $0x28] sm:$0xff]
    %v39 = vld [vmem:[%s1 + $0x30] sm:$0xff]
    %v40 = vld [vmem:[%s1 + $0x38] sm:$0xff]
    %vm41 = vcmask 261120
    %v43 = vsel %vm41, %v32, 0
    %45 = vmatprep.subr.mxu0 0.0
    %46 = vmatpush1.msra.mxu0 0.0
    %47 = vmatprep.subr.mxu0 0.0
    %48 = vmatpush1.msra.mxu0 0.0
    %49 = vmatprep.subr.mxu0 0.0
    %50 = vmatpush1.msra.mxu0 0.0
    %51 = vmatprep.subr.mxu0 0.0
    %52 = vmatpush1.msra.mxu0 0.0
    %53 = vmatprep.subr.mxu0 0.0
    %54 = vmatpush1.msra.mxu0 0.0
    %55 = vmatprep.subr.mxu0 0.0
    %56 = vmatpush1.msra.mxu0 0.0
    %57 = vmatprep.subr.mxu0 0.0
    %58 = vmatpush1.msra.mxu0 0.0
    %59 = vmatprep.subr.mxu0 0.0
    %60 = vmatpush1.msra.mxu0 0.0
    %61 = vmatprep.subr.mxu0 0.0
    %62 = vmatpush1.msra.mxu0 0.0
    %63 = vmatprep.subr.mxu0 0.0
    %64 = vmatpush1.msra.mxu0 0.0
    %65 = vmatprep.subr.mxu0 0.0
    %66 = vmatpush1.msra.mxu0 0.0
    %67 = vmatprep.subr.mxu0 0.0
    %68 = vmatpush1.msra.mxu0 0.0
    %69 = vmatprep.subr.mxu0 %v40
    %70 = vmatpush1.msra.mxu0 %v39
    %71 = vmatprep.subr.mxu0 %v38
    %72 = vmatpush1.msra.mxu0 %v37
    %73 = vmatprep.subr.mxu0 %v36
    %74 = vmatpush1.msra.mxu0 %v35
    %75 = vmatprep.subr.mxu0 %v34
    %76 = vmatpush1.msra.mxu0 %v33
    %77 = vmatprep.subr.mxu0 0.0
    %78 = vmatpush2.msra.mxu0 0.0
    %79 = vmatprep.subr.mxu0 0.0
    %80 = vmatpush2.msra.mxu0 0.0
    %81 = vmatprep.subr.mxu0 0.0
    %82 = vmatpush2.msra.mxu0 0.0
    %83 = vmatprep.subr.mxu0 0.0
    %84 = vmatpush2.msra.mxu0 0.0
    %85 = vmatprep.subr.mxu0 0.0
    %86 = vmatpush2.msra.mxu0 0.0
    %87 = vmatprep.subr.mxu0 0.0
    %88 = vmatpush2.msra.mxu0 0.0
    %89 = vmatprep.subr.mxu0 0.0
    %90 = vmatpush2.msra.mxu0 0.0
    %91 = vmatprep.subr.mxu0 0.0
    %92 = vmatpush2.msra.mxu0 0.0
    %93 = vmatprep.subr.mxu0 0.0
    %94 = vmatpush2.msra.mxu0 0.0
    %95 = vmatprep.subr.mxu0 0.0
    %96 = vmatpush2.msra.mxu0 0.0
    %97 = vmatprep.subr.mxu0 0.0
    %98 = vmatpush2.msra.mxu0 0.0
    %99 = vmatprep.subr.mxu0 0.0
    %100 = vmatpush2.msra.mxu0 0.0
    %101 = vmatprep.subr.mxu0 0.0
    %102 = vmatpush2.msra.mxu0 0.0
    %103 = vmatprep.subr.mxu0 0.0
    %104 = vmatpush2.msra.mxu0 0.0
    %105 = vmatprep.subr.mxu0 0.0
    %106 = vmatpush2.msra.mxu0 0.0
    %107 = vmatprep.subr.mxu0 0.0
    %108 = vmatpush2.msra.mxu0 0.0
    %109 = vmatprep.mubr.f32.mxu0 0.0
    %110 = vmatmul.mubr.f32.gmra.mxu0 %v43
    %v111 = vpop.f32.mrf.mxu0
    %v112 = vadd.f32 0.0, %v111
    %v113 = vpop.f32.mrf.mxu0
    %v114 = vadd.f32 0.0, %v113
    %115 = vdwg.mxu0
    %v116 = vxor.u32 %v112, 2147483648
    %v117 = vxor.u32 %v114, 2147483648
    %v118 = vmul.f32 %v116, 1.442695
    %v119 = vpow.pop %v118
    %v120 = vmul.f32 %v117, 1.442695
    %v121 = vpow.pop %v120
    %v122 = vadd.f32 %v119, 1.0
    %v123 = vadd.f32 %v121, 1.0
    %v124 = vrcp.pop %v122
    %v125 = vmul.f32 1.0, %v124
    %v126 = vrcp.pop %v123
    %v127 = vmul.f32 1.0, %v126
    %v128 = vld [vmem:[#allocation2] sm:$0xff]
    %v129 = vld [vmem:[#allocation2 + $0x8] sm:$0xff]
    %v130 = vld [vmem:[#allocation2 + $0x10] sm:$0xff]
    %v131 = vld [vmem:[#allocation2 + $0x18] sm:$0xff]
    %v132 = vld [vmem:[#allocation2 + $0x20] sm:$0xff]
    %v133 = vld [vmem:[#allocation2 + $0x28] sm:$0xff]
    %v134 = vld [vmem:[#allocation2 + $0x30] sm:$0xff]
    %v135 = vld [vmem:[#allocation2 + $0x38] sm:$0xff]
    %v136 = vld [vmem:[#allocation2 + $0x40] sm:$0xff]
    %v137 = vld [vmem:[#allocation2 + $0x48] sm:$0xff]
    %v138 = vld [vmem:[#allocation2 + $0x50] sm:$0xff]
    %v139 = vld [vmem:[#allocation2 + $0x58] sm:$0xff]
    %v140 = vld [vmem:[#allocation2 + $0x60] sm:$0xff]
    %v141 = vld [vmem:[#allocation2 + $0x68] sm:$0xff]
    %v142 = vld [vmem:[#allocation2 + $0x70] sm:$0xff]
    %v143 = vld [vmem:[#allocation2 + $0x78] sm:$0xff]
    %v144 = vld [vmem:[#allocation2 + $0x80] sm:$0xff]
    %v145 = vld [vmem:[#allocation2 + $0x88] sm:$0xff]
    %v146 = vld [vmem:[#allocation2 + $0x90] sm:$0xff]
    %v147 = vld [vmem:[#allocation2 + $0x98] sm:$0xff]
    %v148 = vld [vmem:[#allocation2 + $0xa0] sm:$0xff]
    %v149 = vld [vmem:[#allocation2 + $0xa8] sm:$0xff]
    %v150 = vld [vmem:[#allocation2 + $0xb0] sm:$0xff]
    %v151 = vld [vmem:[#allocation2 + $0xb8] sm:$0xff]
    %v152 = vld [vmem:[#allocation2 + $0xc0] sm:$0xff]
    %v153 = vld [vmem:[#allocation2 + $0xc8] sm:$0xff]
    %v154 = vld [vmem:[#allocation2 + $0xd0] sm:$0xff]
    %v155 = vld [vmem:[#allocation2 + $0xd8] sm:$0xff]
    %v156 = vld [vmem:[#allocation2 + $0xe0] sm:$0xff]
    %v157 = vld [vmem:[#allocation2 + $0xe8] sm:$0xff]
    %v158 = vld [vmem:[#allocation2 + $0xf0] sm:$0xff]
    %v159 = vld [vmem:[#allocation2 + $0xf8] sm:$0xff]
    %v160 = vld [vmem:[#allocation2 + $0x100] sm:$0xff]
    %v161 = vld [vmem:[#allocation2 + $0x108] sm:$0xff]
    %v162 = vld [vmem:[#allocation2 + $0x110] sm:$0xff]
    %v163 = vld [vmem:[#allocation2 + $0x118] sm:$0xff]
    %v164 = vld [vmem:[#allocation2 + $0x120] sm:$0xff]
    %v165 = vld [vmem:[#allocation2 + $0x128] sm:$0xff]
    %v166 = vld [vmem:[#allocation2 + $0x130] sm:$0xff]
    %v167 = vld [vmem:[#allocation2 + $0x138] sm:$0xff]
    %v168 = vld [vmem:[#allocation2 + $0x140] sm:$0xff]
    %v169 = vld [vmem:[#allocation2 + $0x148] sm:$0xff]
    %v170 = vld [vmem:[#allocation2 + $0x150] sm:$0xff]
    %v171 = vld [vmem:[#allocation2 + $0x158] sm:$0xff]
    %v172 = vld [vmem:[#allocation2 + $0x160] sm:$0xff]
    %v173 = vld [vmem:[#allocation2 + $0x168] sm:$0xff]
    %v174 = vld [vmem:[#allocation2 + $0x170] sm:$0xff]
    %v175 = vld [vmem:[#allocation2 + $0x178] sm:$0xff]
    %v176 = vld [vmem:[#allocation2 + $0x180] sm:$0xff]
    %v177 = vld [vmem:[#allocation2 + $0x188] sm:$0xff]
    %v178 = vld [vmem:[#allocation2 + $0x190] sm:$0xff]
    %v179 = vld [vmem:[#allocation2 + $0x198] sm:$0xff]
    %v180 = vld [vmem:[#allocation2 + $0x1a0] sm:$0xff]
    %v181 = vld [vmem:[#allocation2 + $0x1a8] sm:$0xff]
    %v182 = vld [vmem:[#allocation2 + $0x1b0] sm:$0xff]
    %v183 = vld [vmem:[#allocation2 + $0x1b8] sm:$0xff]
    %v184 = vld [vmem:[#allocation2 + $0x1c0] sm:$0xff]
    %v185 = vld [vmem:[#allocation2 + $0x1c8] sm:$0xff]
    %v186 = vld [vmem:[#allocation2 + $0x1d0] sm:$0xff]
    %v187 = vld [vmem:[#allocation2 + $0x1d8] sm:$0xff]
    %v188 = vld [vmem:[#allocation2 + $0x1e0] sm:$0xff]
    %v189 = vld [vmem:[#allocation2 + $0x1e8] sm:$0xff]
    %v190 = vld [vmem:[#allocation2 + $0x1f0] sm:$0xff]
    %v191 = vld [vmem:[#allocation2 + $0x1f8] sm:$0xff]
    %192 = vmatprep.subr.mxu0 %v159
    %193 = vmatpush1.msra.mxu0 %v158
    %194 = vmatprep.subr.mxu0 %v157
    %195 = vmatpush1.msra.mxu0 %v156
    %196 = vmatprep.subr.mxu0 %v155
    %197 = vmatpush1.msra.mxu0 %v154
    %198 = vmatprep.subr.mxu0 %v153
    %199 = vmatpush1.msra.mxu0 %v152
    %200 = vmatprep.subr.mxu0 %v151
    %201 = vmatpush1.msra.mxu0 %v150
    %202 = vmatprep.subr.mxu0 %v149
    %203 = vmatpush1.msra.mxu0 %v148
    %204 = vmatprep.subr.mxu0 %v147
    %205 = vmatpush1.msra.mxu0 %v146
    %206 = vmatprep.subr.mxu0 %v145
    %207 = vmatpush1.msra.mxu0 %v144
    %208 = vmatprep.subr.mxu0 %v143
    %209 = vmatpush1.msra.mxu0 %v142
    %210 = vmatprep.subr.mxu0 %v141
    %211 = vmatpush1.msra.mxu0 %v140
    %212 = vmatprep.subr.mxu0 %v139
    %213 = vmatpush1.msra.mxu0 %v138
    %214 = vmatprep.subr.mxu0 %v137
    %215 = vmatpush1.msra.mxu0 %v136
    %216 = vmatprep.subr.mxu0 %v135
    %217 = vmatpush1.msra.mxu0 %v134
    %218 = vmatprep.subr.mxu0 %v133
    %219 = vmatpush1.msra.mxu0 %v132
    %220 = vmatprep.subr.mxu0 %v131
    %221 = vmatpush1.msra.mxu0 %v130
    %222 = vmatprep.subr.mxu0 %v129
    %223 = vmatpush1.msra.mxu0 %v128
    %224 = vmatprep.subr.mxu0 %v191
    %225 = vmatpush2.msra.mxu0 %v190
    %226 = vmatprep.subr.mxu0 %v189
    %227 = vmatpush2.msra.mxu0 %v188
    %228 = vmatprep.subr.mxu0 %v187
    %229 = vmatpush2.msra.mxu0 %v186
    %230 = vmatprep.subr.mxu0 %v185
    %231 = vmatpush2.msra.mxu0 %v184
    %232 = vmatprep.subr.mxu0 %v183
    %233 = vmatpush2.msra.mxu0 %v182
    %234 = vmatprep.subr.mxu0 %v181
    %235 = vmatpush2.msra.mxu0 %v180
    %236 = vmatprep.subr.mxu0 %v179
    %237 = vmatpush2.msra.mxu0 %v178
    %238 = vmatprep.subr.mxu0 %v177
    %239 = vmatpush2.msra.mxu0 %v176
    %240 = vmatprep.subr.mxu0 %v175
    %241 = vmatpush2.msra.mxu0 %v174
    %242 = vmatprep.subr.mxu0 %v173
    %243 = vmatpush2.msra.mxu0 %v172
    %244 = vmatprep.subr.mxu0 %v171
    %245 = vmatpush2.msra.mxu0 %v170
    %246 = vmatprep.subr.mxu0 %v169
    %247 = vmatpush2.msra.mxu0 %v168
    %248 = vmatprep.subr.mxu0 %v167
    %249 = vmatpush2.msra.mxu0 %v166
    %250 = vmatprep.subr.mxu0 %v165
    %251 = vmatpush2.msra.mxu0 %v164
    %252 = vmatprep.subr.mxu0 %v163
    %253 = vmatpush2.msra.mxu0 %v162
    %254 = vmatprep.subr.mxu0 %v161
    %255 = vmatpush2.msra.mxu0 %v160
    %256 = vmatprep.mubr.f32.mxu0 %v127
    %257 = vmatmul.mubr.f32.gmra.mxu0 %v125
    %v258 = vpop.f32.mrf.mxu0
    %v259 = vadd.f32 0.0, %v258
    %v260 = vpop.f32.mrf.mxu0
    %v261 = vadd.f32 0.0, %v260
    %262 = vdwg.mxu0
    %v263 = vxor.u32 %v259, 2147483648
    %v264 = vxor.u32 %v261, 2147483648
    %v265 = vmul.f32 %v263, 1.442695
    %v266 = vpow.pop %v265
    %v267 = vmul.f32 %v264, 1.442695
    %v268 = vpow.pop %v267
    %v269 = vadd.f32 %v266, 1.0
    %v270 = vadd.f32 %v268, 1.0
    %v271 = vrcp.pop %v269
    %v272 = vmul.f32 1.0, %v271
    %v273 = vrcp.pop %v270
    %v274 = vmul.f32 1.0, %v273
    %v275 = vld [vmem:[%s3] sm:$0xff]
    %v276 = vld [vmem:[%s3 + $0x8] sm:$0xff]
    %v277 = vld [vmem:[%s3 + $0x10] sm:$0xff]
    %v278 = vld [vmem:[%s3 + $0x18] sm:$0xff]
    %v279 = vld [vmem:[%s3 + $0x20] sm:$0xff]
    %v280 = vld [vmem:[%s3 + $0x28] sm:$0xff]
    %v281 = vld [vmem:[%s3 + $0x30] sm:$0xff]
    %v282 = vld [vmem:[%s3 + $0x38] sm:$0xff]
    %v283 = vld [vmem:[%s3 + $0x40] sm:$0xff]
    %v284 = vld [vmem:[%s3 + $0x48] sm:$0xff]
    %v285 = vld [vmem:[%s3 + $0x50] sm:$0xff]
    %v286 = vld [vmem:[%s3 + $0x58] sm:$0xff]
    %v287 = vld [vmem:[%s3 + $0x60] sm:$0xff]
    %v288 = vld [vmem:[%s3 + $0x68] sm:$0xff]
    %v289 = vld [vmem:[%s3 + $0x70] sm:$0xff]
    %v290 = vld [vmem:[%s3 + $0x78] sm:$0xff]
    %v291 = vld [vmem:[%s3 + $0x80] sm:$0xff]
    %v292 = vld [vmem:[%s3 + $0x88] sm:$0xff]
    %v293 = vld [vmem:[%s3 + $0x90] sm:$0xff]
    %v294 = vld [vmem:[%s3 + $0x98] sm:$0xff]
    %v295 = vld [vmem:[%s3 + $0xa0] sm:$0xff]
    %v296 = vld [vmem:[%s3 + $0xa8] sm:$0xff]
    %v297 = vld [vmem:[%s3 + $0xb0] sm:$0xff]
    %v298 = vld [vmem:[%s3 + $0xb8] sm:$0xff]
    %v299 = vld [vmem:[%s3 + $0xc0] sm:$0xff]
    %v300 = vld [vmem:[%s3 + $0xc8] sm:$0xff]
    %v301 = vld [vmem:[%s3 + $0xd0] sm:$0xff]
    %v302 = vld [vmem:[%s3 + $0xd8] sm:$0xff]
    %v303 = vld [vmem:[%s3 + $0xe0] sm:$0xff]
    %v304 = vld [vmem:[%s3 + $0xe8] sm:$0xff]
    %v305 = vld [vmem:[%s3 + $0xf0] sm:$0xff]
    %v306 = vld [vmem:[%s3 + $0xf8] sm:$0xff]
    %307 = vmatprep.subr.mxu0 0.0
    %308 = vmatpush1.msra.mxu0 %v290
    %309 = vmatprep.subr.mxu0 0.0
    %310 = vmatpush1.msra.mxu0 %v289
    %311 = vmatprep.subr.mxu0 0.0
    %312 = vmatpush1.msra.mxu0 %v288
    %313 = vmatprep.subr.mxu0 0.0
    %314 = vmatpush1.msra.mxu0 %v287
    %315 = vmatprep.subr.mxu0 0.0
    %316 = vmatpush1.msra.mxu0 %v286
    %317 = vmatprep.subr.mxu0 0.0
    %318 = vmatpush1.msra.mxu0 %v285
    %319 = vmatprep.subr.mxu0 0.0
    %320 = vmatpush1.msra.mxu0 %v284
    %321 = vmatprep.subr.mxu0 0.0
    %322 = vmatpush1.msra.mxu0 %v283
    %323 = vmatprep.subr.mxu0 0.0
    %324 = vmatpush1.msra.mxu0 %v282
    %325 = vmatprep.subr.mxu0 0.0
    %326 = vmatpush1.msra.mxu0 %v281
    %327 = vmatprep.subr.mxu0 0.0
    %328 = vmatpush1.msra.mxu0 %v280
    %329 = vmatprep.subr.mxu0 0.0
    %330 = vmatpush1.msra.mxu0 %v279
    %331 = vmatprep.subr.mxu0 0.0
    %332 = vmatpush1.msra.mxu0 %v278
    %333 = vmatprep.subr.mxu0 0.0
    %334 = vmatpush1.msra.mxu0 %v277
    %335 = vmatprep.subr.mxu0 0.0
    %336 = vmatpush1.msra.mxu0 %v276
    %337 = vmatprep.subr.mxu0 0.0
    %338 = vmatpush1.msra.mxu0 %v275
    %339 = vmatprep.subr.mxu0 0.0
    %340 = vmatpush2.msra.mxu0 %v306
    %341 = vmatprep.subr.mxu0 0.0
    %342 = vmatpush2.msra.mxu0 %v305
    %343 = vmatprep.subr.mxu0 0.0
    %344 = vmatpush2.msra.mxu0 %v304
    %345 = vmatprep.subr.mxu0 0.0
    %346 = vmatpush2.msra.mxu0 %v303
    %347 = vmatprep.subr.mxu0 0.0
    %348 = vmatpush2.msra.mxu0 %v302
    %349 = vmatprep.subr.mxu0 0.0
    %350 = vmatpush2.msra.mxu0 %v301
    %351 = vmatprep.subr.mxu0 0.0
    %352 = vmatpush2.msra.mxu0 %v300
    %353 = vmatprep.subr.mxu0 0.0
    %354 = vmatpush2.msra.mxu0 %v299
    %355 = vmatprep.subr.mxu0 0.0
    %356 = vmatpush2.msra.mxu0 %v298
    %357 = vmatprep.subr.mxu0 0.0
    %358 = vmatpush2.msra.mxu0 %v297
    %359 = vmatprep.subr.mxu0 0.0
    %360 = vmatpush2.msra.mxu0 %v296
    %361 = vmatprep.subr.mxu0 0.0
    %362 = vmatpush2.msra.mxu0 %v295
    %363 = vmatprep.subr.mxu0 0.0
    %364 = vmatpush2.msra.mxu0 %v294
    %365 = vmatprep.subr.mxu0 0.0
    %366 = vmatpush2.msra.mxu0 %v293
    %367 = vmatprep.subr.mxu0 0.0
    %368 = vmatpush2.msra.mxu0 %v292
    %369 = vmatprep.subr.mxu0 0.0
    %370 = vmatpush2.msra.mxu0 %v291
    %371 = vmatprep.mubr.f32.mxu0 %v274
    %372 = vmatmul.mubr.f32.gmra.mxu0 %v272
    %v373 = vpop.f32.mrf.mxu0
    %v374 = vadd.f32 0.0, %v373
    %v375 = vpop.f32.mrf.mxu0
    %376 = vdwg.mxu0
    %377 = vst.msk [vmem:[#allocation5] sm:$0xff] %vm41, %v374
    // Predicated region
    $region22: #{tpu_custom_call.1} parent=1 // pred_check
      _
    $region23: #{tpu_custom_call.1} parent=1 // pred_check_branch
      %379 = sbr.rel (0) target = $region25
    $region24: #{tpu_custom_call.1} parent=1 // pred_region
      %s381 = ssub.s32 128, 128
      %382 = vsyncadd [#allocation4], %s381
      %s384 = sshll.u32 [#allocation5], 4
      %s385 = int_to_ptr.vmem [resolvable:$true] %s384
      %387 = dma.vmem_to_hbm [thread:$0]  %s385, 128, %s4, [#allocation4]
    $region25: #{tpu_custom_call.1} parent=1 // pred_fallthru
      _
    // Predicated region
    $region26: #{tpu_custom_call.1} parent=1 // pred_check
      _
    $region27: #{tpu_custom_call.1} parent=1 // pred_check_branch
      %389 = sbr.rel (0) target = $region29
    $region28: #{tpu_custom_call.1} parent=1 // pred_region
      %390 = dma.done [#allocation4], 128
    $region29: #{tpu_custom_call.1} parent=1 // pred_fallthru
      _
    %391 = vsyncpa [#allocation3], 1
    %392 = vsyncpa [#allocation4], 1

</llo_original>
